<compile_context>
chip_gen: v7x
topology: tpu7x:2x2x1
jax: 0.10.0
libtpu: 0.0.40
codegen_flags: <defaults>
</compile_context>

<pallas_src>
import functools

import numpy as np
import jax
import jax.numpy as jnp
from jax.experimental import pallas as pl
from jax.experimental.pallas import tpu as pltpu


# ----------------------------------------------------------------------------
# helpers
# ----------------------------------------------------------------------------
def _pick_row_tile(rows, row_bytes, target_bytes=4 << 20):
    """Largest multiple-of-8 divisor of `rows` whose tile stays near target_bytes.

    Falls back to the full extent when rows is not a multiple of 8 (small
    batches / odd sizes -> single tile, block == full array dims is legal)."""
    if rows <= 0 or rows % 8 != 0:
        return max(rows, 1)
    max_rows = max(8, (target_bytes // max(1, row_bytes)) // 8 * 8)
    best = 8
    d = 8
    limit = min(rows, max_rows)
    while d <= limit:
        if rows % d == 0:
            best = d
        d += 8
    return best


# ----------------------------------------------------------------------------
# Kernel 1: weighted center loss (per-tile partial sums)
#   partial = sum( (feat_tile - centers[label_tile])^2 * weight )
#   weight  = [1/100]*(C//16*2) ++ [1.0]*(C//16*14)   (per row, broadcast)
# ----------------------------------------------------------------------------
def _center_loss_kernel(label_ref, feat_ref, centers_ref, part_ref, *, k):
    # label_ref:   (TM, 1)    int32  VMEM
    # feat_ref:    (TM, C)    native VMEM (upcast in-kernel)
    # centers_ref: (NCLS, C)  native VMEM (resident: constant index map)
    # part_ref:    (1, 1)     f32 SMEM -> per-tile partial sum
    labels = label_ref[...]                                       # (TM, 1) int32
    ncls = centers_ref.shape[0]
    tm = labels.shape[0]

    # In-kernel gather of centers[label] as a one-hot MXU matmul (exact for
    # 0/1 weights in f32); avoids any HBM-materialized (B, C) centers_batch.
    cls_iota = jax.lax.broadcasted_iota(jnp.int32, (tm, ncls), 1)
    one_hot = (labels == cls_iota).astype(jnp.float32)            # (TM, NCLS)
    cb = jnp.dot(one_hot, centers_ref[...].astype(jnp.float32),
                 preferred_element_type=jnp.float32)              # (TM, C)

    diff = feat_ref[...].astype(jnp.float32) - cb
    sq = diff * diff
    c = sq.shape[1]
    if 0 < k < c and k % 128 == 0:
        # lane-aligned static split: skips the per-element select (helps v5e VALU)
        part = jnp.float32(0.01) * jnp.sum(sq[:, :k]) + jnp.sum(sq[:, k:])
    else:
        col = jax.lax.broadcasted_iota(jnp.int32, sq.shape, 1)
        w = jnp.where(col < k, jnp.float32(0.01), jnp.float32(1.0))
        part = jnp.sum(sq * w)
    part_ref[0, 0] = part


def center_loss_pallas(feat2d, label, centers):
    b, c = feat2d.shape
    ncls = centers.shape[0]
    k = (c // 16) * 2

    tm = _pick_row_tile(b, c * feat2d.dtype.itemsize)
    ntiles = b // tm
    label2d = label.astype(jnp.int32).reshape(b, 1)

    # TODO(synk): if num_classes * feat_dim no longer fits VMEM, tile the class
    # axis (or switch to per-row DMA gather); here centers stay resident.
    est = (2 * tm * c * feat2d.dtype.itemsize
           + 2 * ncls * c * centers.dtype.itemsize
           + 2 * tm * 4 + (2 << 20))
    vmem_limit = int(min(64 << 20, max(32 << 20, est)))

    partials = pl.pallas_call(
        functools.partial(_center_loss_kernel, k=k),
        out_shape=jax.ShapeDtypeStruct((ntiles, 1), jnp.float32),
        grid=(ntiles,),
        in_specs=[
            pl.BlockSpec((tm, 1), lambda i: (i, 0)),        # labels
            pl.BlockSpec((tm, c), lambda i: (i, 0)),        # feature rows
            pl.BlockSpec((ncls, c), lambda i: (0, 0)),      # centers (resident)
        ],
        out_specs=pl.BlockSpec((1, 1), lambda i: (i, 0), memory_space=pltpu.SMEM),
        compiler_params=pltpu.CompilerParams(
            dimension_semantics=("parallel",),
            vmem_limit_bytes=vmem_limit),
    )(label2d, feat2d, centers)
    return jnp.sum(partials)


# ----------------------------------------------------------------------------
# Kernel 2: mean pairwise center distance over the first feat_dim//4 columns
#   distance = mean_i sqrt( sum_{d < D/4} (a[i,d] - b[i,d])^2 )
# Full-width rows come in; the column restriction happens in-kernel so the
# wrapper never materializes a lane-unaligned sliced copy.
# ----------------------------------------------------------------------------
def _center_distance_kernel(a_ref, b_ref, part_ref, *, d4):
    # a_ref, b_ref: (TM, C) native VMEM;  part_ref: (1, 1) f32 SMEM
    d = a_ref[...].astype(jnp.float32) - b_ref[...].astype(jnp.float32)
    c = d.shape[1]
    if 0 < d4 < c and d4 % 128 == 0:
        dd = d[:, :d4]
        s = jnp.sum(dd * dd, axis=1, keepdims=True)
    else:
        col = jax.lax.broadcasted_iota(jnp.int32, d.shape, 1)
        dm = jnp.where(col < d4, d, jnp.float32(0.0))
        s = jnp.sum(dm * dm, axis=1, keepdims=True)
    part_ref[0, 0] = jnp.sum(jnp.sqrt(s))


def center_distance_pallas(a, b, d4):
    n, c = a.shape
    tm = _pick_row_tile(n, c * a.dtype.itemsize)
    ntiles = n // tm

    est = 4 * tm * c * a.dtype.itemsize + (2 << 20)
    vmem_limit = int(min(64 << 20, max(32 << 20, est)))

    partials = pl.pallas_call(
        functools.partial(_center_distance_kernel, d4=d4),
        out_shape=jax.ShapeDtypeStruct((ntiles, 1), jnp.float32),
        grid=(ntiles,),
        in_specs=[
            pl.BlockSpec((tm, c), lambda i: (i, 0)),
            pl.BlockSpec((tm, c), lambda i: (i, 0)),
        ],
        out_specs=pl.BlockSpec((1, 1), lambda i: (i, 0), memory_space=pltpu.SMEM),
        compiler_params=pltpu.CompilerParams(
            dimension_semantics=("parallel",),
            vmem_limit_bytes=vmem_limit),
    )(a, b)
    return jnp.sum(partials) / jnp.float32(n)


# ----------------------------------------------------------------------------
# Module wrapper (forward only)
# ----------------------------------------------------------------------------
class CenterDistanceLoss:
    def __init__(self, num_classes, feat_dim, size_average=True, bia=0.4, key=None):
        # The torch reference implicitly requires these (its weight concat /
        # pairwise subtraction would otherwise fail to broadcast).
        assert feat_dim % 16 == 0, "feat_dim must be divisible by 16 (weight layout)"
        assert num_classes % 2 == 0, "num_classes must be even (pairwise distance)"
        if key is None:
            key = jax.random.PRNGKey(0)
        # nn.Parameter(torch.randn(num_classes, feat_dim)) -> deterministic init
        self.centers = jax.random.normal(key, (num_classes, feat_dim), dtype=jnp.float32)
        self.num_classes = num_classes
        self.feat_dim = feat_dim
        self.size_average = size_average
        self.bia = bia

    def compute_center_distance(self, perm):
        half = self.num_classes // 2
        idx_a = jnp.asarray(np.asarray(perm[:half]), dtype=jnp.int32)
        idx_b = jnp.asarray(np.asarray(perm[half:]), dtype=jnp.int32)
        # Row gather of full-width center rows (tiny); column restriction to
        # feat_dim//4 happens inside the kernel.
        a = jnp.take(self.centers, idx_a, axis=0)
        b = jnp.take(self.centers, idx_b, axis=0)
        return center_distance_pallas(a, b, self.feat_dim // 4)

    def __call__(self, label, feat, perm=None):
        batch_size = feat.shape[0]
        feat2d = feat.reshape(batch_size, -1)
        if feat2d.shape[1] != self.feat_dim:
            raise ValueError(
                "Center's dim: {0} should be equal to input feature's dim: {1}".format(
                    self.feat_dim, feat2d.shape[1]))

        loss = center_loss_pallas(feat2d, label, self.centers) / 2.0
        if self.size_average:
            loss = loss / batch_size

        # torch uses np.random.permutation (non-deterministic); we take a
        # deterministic host-side permutation for reproducibility.
        if perm is None:
            perm = np.random.RandomState(0).permutation(self.num_classes)
        distance = self.compute_center_distance(perm)

        d_loss = 1.0 / (distance + self.bia)   # torch.reciprocal(distance + bia)
        return loss, d_loss, distance


if __name__ == "__main__":
    key = jax.random.PRNGKey(0)
    k_centers, k_feat, k_label = jax.random.split(key, 3)

    num_classes, feat_dim = 8, 32
    B, C, H, W = 2, 2, 4, 4            # NCHW, C*H*W == feat_dim

    module = CenterDistanceLoss(num_classes, feat_dim, size_average=True,
                                bia=0.4, key=k_centers)

    feat = jax.random.normal(k_feat, (B, C, H, W), dtype=jnp.float32)
    label = jax.random.randint(k_label, (B,), 0, num_classes, dtype=jnp.int32)
    perm = np.random.RandomState(0).permutation(num_classes)

    loss, d_loss, distance = module(label, feat, perm=perm)
    jax.block_until_ready((loss, d_loss, distance))
    print("KERNEL_OK")
</pallas_src>

<mosaic_0001>
module attributes {stable_mosaic.version = 11 : i64} {
  func.func @_center_loss_kernel(%arg0: i32, %arg1: memref<2x1xi32, #tpu.memory_space<vmem>>, %arg2: memref<2x32xf32, #tpu.memory_space<vmem>>, %arg3: memref<8x32xf32, #tpu.memory_space<vmem>>, %arg4: memref<1x1xf32, #tpu.memory_space<smem>>) attributes {dimension_semantics = [#tpu.dimension_semantics<parallel>], iteration_bounds = array<i64: 1>, scalar_prefetch = 0 : i64, scratch_operands = 0 : i64, tpu.core_type = #tpu.core_type<tc>, window_params = [{transform_indices = @transform_0, window_bounds = array<i64: 2, 1>}, {transform_indices = @transform_1, window_bounds = array<i64: 2, 32>}, {pipeline_mode = #tpu.pipeline_mode<synchronous>, transform_indices = @transform_2, window_bounds = array<i64: 8, 32>}, {transform_indices = @transform_3, window_bounds = array<i64: 1, 1>}]} {
    %c0 = arith.constant 0 : index
    %c0_0 = arith.constant 0 : index
    %0 = vector.load %arg1[%c0, %c0_0] : memref<2x1xi32, #tpu.memory_space<vmem>>, vector<2x1xi32>
    %1 = tpu.iota {dimensions = array<i32: 1>} : vector<2x8xi32>
    %2 = vector.broadcast %0 : vector<2x1xi32> to vector<2x8xi32>
    %3 = arith.cmpi eq, %2, %1 : vector<2x8xi32>
    %4 = arith.extui %3 : vector<2x8xi1> to vector<2x8xi32>
    %5 = arith.sitofp %4 : vector<2x8xi32> to vector<2x8xf32>
    %c0_1 = arith.constant 0 : index
    %c0_2 = arith.constant 0 : index
    %6 = vector.load %arg3[%c0_1, %c0_2] : memref<8x32xf32, #tpu.memory_space<vmem>>, vector<8x32xf32>
    %cst = arith.constant dense<0.000000e+00> : vector<2x32xf32>
    %7 = tpu.matmul %5, %6, %cst {dimension_numbers = #tpu.dot_dimension_numbers<[1], [0], [0], [1], [0, 0, 1, 1], [], []>} : vector<2x8xf32>, vector<8x32xf32>, vector<2x32xf32> -> vector<2x32xf32>
    %c0_3 = arith.constant 0 : index
    %c0_4 = arith.constant 0 : index
    %8 = vector.load %arg2[%c0_3, %c0_4] : memref<2x32xf32, #tpu.memory_space<vmem>>, vector<2x32xf32>
    %9 = arith.subf %8, %7 : vector<2x32xf32>
    %10 = arith.mulf %9, %9 : vector<2x32xf32>
    %11 = tpu.iota {dimensions = array<i32: 1>} : vector<2x32xi32>
    %c4_i32 = arith.constant 4 : i32
    %12 = vector.broadcast %c4_i32 : i32 to vector<2x32xi32>
    %13 = arith.cmpi slt, %11, %12 : vector<2x32xi32>
    %cst_5 = arith.constant 0.00999999977 : f32
    %cst_6 = arith.constant 1.000000e+00 : f32
    %14 = vector.broadcast %cst_5 : f32 to vector<2x32xf32>
    %15 = vector.broadcast %cst_6 : f32 to vector<2x32xf32>
    %16 = arith.select %13, %14, %15 : vector<2x32xi1>, vector<2x32xf32>
    %17 = arith.mulf %10, %16 : vector<2x32xf32>
    %18 = vector.shape_cast %17 : vector<2x32xf32> to vector<1x2x32xf32>
    %cst_7 = arith.constant dense<0.000000e+00> : vector<1xf32>
    %19 = vector.multi_reduction <add>, %18, %cst_7 [1, 2] : vector<1x2x32xf32> to vector<1xf32>
    %20 = vector.shape_cast %19 : vector<1xf32> to vector<1x1x1xf32>
    %21 = vector.extract %20[0, 0, 0] : f32 from vector<1x1x1xf32>
    %c0_8 = arith.constant 0 : index
    %c0_9 = arith.constant 0 : index
    %22 = memref.load %arg4[%c0_8, %c0_9] : memref<1x1xf32, #tpu.memory_space<smem>>
    memref.store %21, %arg4[%c0_8, %c0_9] : memref<1x1xf32, #tpu.memory_space<smem>>
    return
  }
  func.func @transform_0(%arg0: i32) -> (i32, i32) {
    %c0_i32 = arith.constant 0 : i32
    %c0_i32_0 = arith.constant 0 : i32
    return %arg0, %c0_i32 : i32, i32
  }
  func.func @transform_1(%arg0: i32) -> (i32, i32) {
    %c0_i32 = arith.constant 0 : i32
    %c0_i32_0 = arith.constant 0 : i32
    return %arg0, %c0_i32 : i32, i32
  }
  func.func @transform_2(%arg0: i32) -> (i32, i32) {
    %c0_i32 = arith.constant 0 : i32
    %c0_i32_0 = arith.constant 0 : i32
    %c0_i32_1 = arith.constant 0 : i32
    return %c0_i32, %c0_i32_0 : i32, i32
  }
  func.func @transform_3(%arg0: i32) -> (i32, i32) {
    %c0_i32 = arith.constant 0 : i32
    %c0_i32_0 = arith.constant 0 : i32
    return %arg0, %c0_i32 : i32, i32
  }
}

</mosaic_0001>

<llo_original>
// kernel: tpu_custom_call.1
$region0: #{tpu_custom_call.1}
  #allocation0 [shape = 'u32[]', space=smem, size = 0x4, offset = 0x4, fixed_abs, tag = 'smem constant byte address 0x4 - core index']
  #allocation1 [shape = 'u32[144,128]{1,0:T(1,128)}', space=vmem, size = 0x12000, scoped, tag = 'internal scratch']
  %s0 = inlined_call_operand.vmem [shape: s32[2,1], index: 0, kind: input, shape index: {}]
  %s1 = inlined_call_operand.vmem [shape: f32[2,32], index: 1, kind: input, shape index: {}]
  %s2 = inlined_call_operand.vmem [shape: f32[8,32], index: 2, kind: input, shape index: {}]
  %s3 = inlined_call_operand.hbm [shape: f32[1,1], index: 3, kind: output, shape index: {}]
  %s4 = sld [smem:[#allocation0]]
  $region22: #{tpu_custom_call.1} parent=0
    _
  %s6 = ssub.s32 1, %s4
  %s7 = scalar_select 0, %s6, %s4
  $region1: #{tpu_custom_call.1} parent=0
    #allocation2 [shape = 'u8[512]{0}', space=smem, size = 0x200, scoped, tag = 'output window, operand 0, single buffered']
    #allocation3 [shape = 's32[1]{0}', space=sflag, size = 0x4, scoped, tag = 'scoped memory for tpu_custom_call.1']
    %8 = vsyncpa [#allocation3], 0
    // Predicated region
    $region2: #{tpu_custom_call.1} parent=1 // pred_check
      _
    $region3: #{tpu_custom_call.1} parent=1 // pred_check_branch
      %10 = sbr.rel (0) target = $region5
    $region4: #{tpu_custom_call.1} parent=1 // pred_region
      _
    $region5: #{tpu_custom_call.1} parent=1 // pred_fallthru
      _
    // Predicated region
    $region6: #{tpu_custom_call.1} parent=1 // pred_check
      _
    $region7: #{tpu_custom_call.1} parent=1 // pred_check_branch
      %12 = sbr.rel (0) target = $region9
    $region8: #{tpu_custom_call.1} parent=1 // pred_region
      _
    $region9: #{tpu_custom_call.1} parent=1 // pred_fallthru
      _
    // Predicated region
    $region10: #{tpu_custom_call.1} parent=1 // pred_check
      _
    $region11: #{tpu_custom_call.1} parent=1 // pred_check_branch
      %14 = sbr.rel (0) target = $region13
    $region12: #{tpu_custom_call.1} parent=1 // pred_region
      _
    $region13: #{tpu_custom_call.1} parent=1 // pred_fallthru
      _
    %v15 = vld [vmem:[%s0] sm:$0x3]
    %v16 = vlaneseq
    %v17 = vand.u32 %v16, 127
    %18 = vset.pattern.permute.xlu0 0
    %19 = vperm.xlu0 %18, %v15
    %v20 = vpop.permute.xlu0 %19
    %vm21 = vcmp.eq.s32.totalorder %v20, %v17
    %v22 = vsel %vm21, 1, 0
    %v23 = vcvt.s32.f32 %v22
    %v24 = vld [vmem:[%s2] sm:$0xff]
    %vm25 = vcmask 64512
    %v27 = vsel %vm25, %v23, 0
    %29 = vmatprep.subr.mxu0 0.0
    %30 = vmatpush1.msra.mxu0 %v24
    %31 = vmatprep.subr.mxu0 0.0
    %32 = vmatpush1.msra.mxu0 0.0
    %33 = vmatprep.subr.mxu0 0.0
    %34 = vmatpush1.msra.mxu0 0.0
    %35 = vmatprep.subr.mxu0 0.0
    %36 = vmatpush1.msra.mxu0 0.0
    %37 = vmatprep.subr.mxu0 0.0
    %38 = vmatpush1.msra.mxu0 0.0
    %39 = vmatprep.subr.mxu0 0.0
    %40 = vmatpush1.msra.mxu0 0.0
    %41 = vmatprep.subr.mxu0 0.0
    %42 = vmatpush1.msra.mxu0 0.0
    %43 = vmatprep.subr.mxu0 0.0
    %44 = vmatpush1.msra.mxu0 0.0
    %45 = vmatprep.subr.mxu0 0.0
    %46 = vmatpush1.msra.mxu0 0.0
    %47 = vmatprep.subr.mxu0 0.0
    %48 = vmatpush1.msra.mxu0 0.0
    %49 = vmatprep.subr.mxu0 0.0
    %50 = vmatpush1.msra.mxu0 0.0
    %51 = vmatprep.subr.mxu0 0.0
    %52 = vmatpush1.msra.mxu0 0.0
    %53 = vmatprep.subr.mxu0 0.0
    %54 = vmatpush1.msra.mxu0 0.0
    %55 = vmatprep.subr.mxu0 0.0
    %56 = vmatpush1.msra.mxu0 0.0
    %57 = vmatprep.subr.mxu0 0.0
    %58 = vmatpush1.msra.mxu0 0.0
    %59 = vmatprep.subr.mxu0 0.0
    %60 = vmatpush1.msra.mxu0 0.0
    %61 = vmatprep.subr.mxu0 0.0
    %62 = vmatpush1.msra.mxu0 0.0
    %63 = vmatprep.subr.mxu0 0.0
    %64 = vmatpush1.msra.mxu0 0.0
    %65 = vmatprep.subr.mxu0 0.0
    %66 = vmatpush1.msra.mxu0 0.0
    %67 = vmatprep.subr.mxu0 0.0
    %68 = vmatpush1.msra.mxu0 0.0
    %69 = vmatprep.subr.mxu0 0.0
    %70 = vmatpush1.msra.mxu0 0.0
    %71 = vmatprep.subr.mxu0 0.0
    %72 = vmatpush1.msra.mxu0 0.0
    %73 = vmatprep.subr.mxu0 0.0
    %74 = vmatpush1.msra.mxu0 0.0
    %75 = vmatprep.subr.mxu0 0.0
    %76 = vmatpush1.msra.mxu0 0.0
    %77 = vmatprep.subr.mxu0 0.0
    %78 = vmatpush1.msra.mxu0 0.0
    %79 = vmatprep.subr.mxu0 0.0
    %80 = vmatpush1.msra.mxu0 0.0
    %81 = vmatprep.subr.mxu0 0.0
    %82 = vmatpush1.msra.mxu0 0.0
    %83 = vmatprep.subr.mxu0 0.0
    %84 = vmatpush1.msra.mxu0 0.0
    %85 = vmatprep.subr.mxu0 0.0
    %86 = vmatpush1.msra.mxu0 0.0
    %87 = vmatprep.subr.mxu0 0.0
    %88 = vmatpush1.msra.mxu0 0.0
    %89 = vmatprep.subr.mxu0 0.0
    %90 = vmatpush1.msra.mxu0 0.0
    %91 = vmatprep.subr.mxu0 0.0
    %92 = vmatpush1.msra.mxu0 0.0
    %93 = vmatprep.mubr.f32.mxu0 0.0
    %94 = vmatmul.mubr.f32.gmra.mrb[0].mxu0 %v27
    %v95 = vpop.f32.mrb[0].mxu0
    %v96 = vadd.f32 0.0, %v95
    %v97 = vpop.f32.mrb[0].mxu0
    %98 = vdwg.mxu0
    %v99 = vld [vmem:[%s1] sm:$0x3]
    %v100 = vsub.f32 %v99, %v96
    %v101 = vmul.f32 %v100, %v100
    %vm102 = vcmp.lt.s32.totalorder %v17, 4
    %v103 = vsel %vm102, 0.01, 1.0
    %v104 = vmul.f32 %v101, %v103
    %vm105 = vcmask 254976
    %v106 = vsel %vm105, %v104, 0.0
    %107 = vadd.xlane.f32.xlu0 %v106
    %v108 = vpop.xlane.xlu0 %107
    %v109 = vrot.slane %v108, 4
    %v110 = vadd.f32 %v108, %v109
    %v111 = vrot.slane %v110, 2
    %v112 = vadd.f32 %v110, %v111
    %v113 = vrot.slane %v112, 1
    %v114 = vadd.f32 %v112, %v113
    %s115 = vtos %v114
    %s116 = scalar_lea.smem [#allocation2], 0
    %117 = sst [smem:[%s116]] %s115
    // Predicated region
    $region14: #{tpu_custom_call.1} parent=1 // pred_check
      _
    $region15: #{tpu_custom_call.1} parent=1 // pred_check_branch
      %119 = sbr.rel (0) target = $region17
    $region16: #{tpu_custom_call.1} parent=1 // pred_region
      %s121 = ssub.s32 16, 16
      %122 = vsyncadd [#allocation3], %s121
      %125 = dma.smem_to_hbm [#allocation2], 16, %s3, [#allocation3]
    $region17: #{tpu_custom_call.1} parent=1 // pred_fallthru
      _
    // Predicated region
    $region18: #{tpu_custom_call.1} parent=1 // pred_check
      _
    $region19: #{tpu_custom_call.1} parent=1 // pred_check_branch
      %127 = sbr.rel (0) target = $region21
    $region20: #{tpu_custom_call.1} parent=1 // pred_region
      %128 = dma.done [#allocation3], 16
    $region21: #{tpu_custom_call.1} parent=1 // pred_fallthru
      _
    %129 = sfence
    %130 = vsyncpa [#allocation3], 1

</llo_original>
